<compile_context>
chip_gen: v7x
topology: tpu7x:2x2x1
jax: 0.10.0
libtpu: 0.0.40
codegen_flags: <defaults>
</compile_context>

<pallas_src>
import jax
import jax.numpy as jnp
from jax.experimental import pallas as pl
from jax.experimental.pallas import tpu as pltpu


def _tanh_kernel(x_ref, o_ref):
    # Elementwise tanh on the whole VMEM tile (EUP transcendental slot).
    o_ref[...] = jnp.tanh(x_ref[...])


def _round_up(a, b):
    return ((a + b - 1) // b) * b


def pallas_tanh(x):
    """Elementwise tanh of an array via a Pallas TPU kernel."""
    orig_shape = x.shape

    # nn.Tanh is a float op; promote non-float inputs like jnp.tanh would.
    if not jnp.issubdtype(x.dtype, jnp.floating):
        x = x.astype(jnp.float32)
    dtype = x.dtype
    itemsize = jnp.dtype(dtype).itemsize
    n = x.size

    # dtype-aware packed sublane tile: f32 -> 8, bf16/f16 -> 16, int8/fp8 -> 32.
    sublane = max(8, 8 * (4 // itemsize))

    # Lane width: widest lane that divides n (unmasked stores, no forced pad).
    if n % 512 == 0 and n >= 512 * sublane:
        lane = 512
    elif n % 256 == 0 and n >= 256 * sublane:
        lane = 256
    else:
        lane = 128  # pads < 128 elements only if n % 128 != 0 (rare)

    rows = pl.cdiv(n, lane)
    n_pad = rows * lane

    # Block rows targeting ~4 MiB per block. HBM-bound kernel, so big blocks
    # amortize the fixed per-grid-step overhead; 2 arrays x 2 buffers x 4 MiB
    # = 16 MiB resident, safe on v5e/v6e/v7x with the raised vmem limit.
    target_block_bytes = 4 * 1024 * 1024
    tile_rows = max(
        sublane,
        (target_block_bytes // (lane * itemsize)) // sublane * sublane,
    )

    # v7x has 2 TensorCores: for arrays >= ~2 MiB make sure the grid has at
    # least 2 steps so the "parallel" axis shards across both cores.
    if n_pad * itemsize >= 2 * 1024 * 1024:
        half_rows = _round_up(pl.cdiv(rows, 2), sublane)
        tile_rows = min(tile_rows, half_rows)

    # Small arrays: a single full-array block (block == full dim is allowed
    # even when rows is not a sublane multiple).
    tile_rows = min(tile_rows, rows)

    # No rounding of rows to a tile multiple: the partial last block is masked.
    grid = (pl.cdiv(rows, tile_rows),)

    xf = jnp.ravel(x)
    needs_pad = n_pad != n
    if needs_pad:
        # Rare path (n not a multiple of 128); pads < lane elements.
        # TODO(synk): handle the tail with an in-kernel masked store to avoid
        # the wrapper-side pad/slice HBM passes for odd sizes.
        xf = jnp.pad(xf, (0, n_pad - n))
    x2d = xf.reshape(rows, lane)

    out_2d = pl.pallas_call(
        _tanh_kernel,
        out_shape=jax.ShapeDtypeStruct((rows, lane), dtype),
        grid_spec=pltpu.PrefetchScalarGridSpec(
            num_scalar_prefetch=0,
            grid=grid,
            in_specs=[pl.BlockSpec((tile_rows, lane), lambda i: (i, 0))],
            out_specs=pl.BlockSpec((tile_rows, lane), lambda i: (i, 0)),
        ),
        compiler_params=pltpu.CompilerParams(
            dimension_semantics=("parallel",),
            vmem_limit_bytes=40 * 1024 * 1024,
        ),
        cost_estimate=pl.CostEstimate(
            flops=0,
            transcendentals=n,
            bytes_accessed=2 * n * itemsize,
        ),
    )(x2d)

    if needs_pad:
        return out_2d.reshape(-1)[:n].reshape(orig_shape)
    return out_2d.reshape(orig_shape)


def tanh_forward(x1, x2):
    """Mirrors the PyTorch module's forward: arity 2, returns tanh(x1)."""
    del x2  # unused by the original module
    return pallas_tanh(x1)


if __name__ == "__main__":
    key = jax.random.PRNGKey(0)
    k1, k2 = jax.random.split(key)
    shape = (2, 4, 16, 16)  # NCHW-style small example
    x1 = jax.random.normal(k1, shape, dtype=jnp.float32)
    x2 = jax.random.normal(k2, shape, dtype=jnp.float32)

    out = tanh_forward(x1, x2)
    jax.block_until_ready(out)

    ref = jnp.tanh(x1)
    assert out.shape == ref.shape
    assert out.dtype == ref.dtype
    assert jnp.allclose(out, ref, atol=1e-6, rtol=1e-6)
    print("KERNEL_OK")
</pallas_src>

<mosaic_0001>
module attributes {stable_mosaic.version = 11 : i64} {
  func.func @_tanh_kernel(%arg0: i32, %arg1: memref<8x256xf32, #tpu.memory_space<vmem>>, %arg2: memref<8x256xf32, #tpu.memory_space<vmem>>) attributes {dimension_semantics = [#tpu.dimension_semantics<parallel>], iteration_bounds = array<i64: 1>, scalar_prefetch = 0 : i64, scratch_operands = 0 : i64, tpu.core_type = #tpu.core_type<tc>, window_params = [{transform_indices = @transform_0, window_bounds = array<i64: 8, 256>}, {transform_indices = @transform_1, window_bounds = array<i64: 8, 256>}]} {
    %c0 = arith.constant 0 : index
    %c0_0 = arith.constant 0 : index
    %0 = vector.load %arg1[%c0, %c0_0] : memref<8x256xf32, #tpu.memory_space<vmem>>, vector<8x256xf32>
    %1 = math.tanh %0 : vector<8x256xf32>
    %c0_1 = arith.constant 0 : index
    %c0_2 = arith.constant 0 : index
    %2 = vector.load %arg2[%c0_1, %c0_2] : memref<8x256xf32, #tpu.memory_space<vmem>>, vector<8x256xf32>
    tpu.vector_store %arg2[%c0_1, %c0_2], %1 {strides = array<i32>} : memref<8x256xf32, #tpu.memory_space<vmem>>, vector<8x256xf32>,
    return
  }
  func.func @transform_0(%arg0: i32) -> (i32, i32) {
    %c0_i32 = arith.constant 0 : i32
    %c0_i32_0 = arith.constant 0 : i32
    return %arg0, %c0_i32 : i32, i32
  }
  func.func @transform_1(%arg0: i32) -> (i32, i32) {
    %c0_i32 = arith.constant 0 : i32
    %c0_i32_0 = arith.constant 0 : i32
    return %arg0, %c0_i32 : i32, i32
  }
}

</mosaic_0001>

<llo_original>
// kernel: tpu_custom_call.1
$region0: #{tpu_custom_call.1}
  #allocation0 [shape = 'u32[]', space=smem, size = 0x4, offset = 0x4, fixed_abs, tag = 'smem constant byte address 0x4 - core index']
  #allocation1 [shape = 'u32[144,128]{1,0:T(1,128)}', space=vmem, size = 0x12000, scoped, tag = 'internal scratch']
  %s0 = inlined_call_operand.hbm [shape: f32[8,256], index: 0, kind: input, shape index: {}]
  %s1 = inlined_call_operand.hbm [shape: f32[8,256], index: 1, kind: output, shape index: {}]
  %s2 = sld [smem:[#allocation0]]
  $region18: #{tpu_custom_call.1} parent=0
    _
  %s4 = ssub.s32 1, %s2
  %s5 = scalar_select 0, %s4, %s2
  $region1: #{tpu_custom_call.1} parent=0
    #allocation2 [shape = 'u8[8192]{0}', space=vmem, size = 0x2000, scoped, tag = 'input window, operand 0, single buffered']
    #allocation3 [shape = 's32[1]{0}', space=sflag, size = 0x4, scoped, tag = 'scoped memory for tpu_custom_call.1']
    #allocation4 [shape = 's32[1]{0}', space=sflag, size = 0x4, scoped, tag = 'scoped memory for tpu_custom_call.1']
    #allocation5 [shape = 'u8[8192]{0}', space=vmem, size = 0x2000, scoped, tag = 'output window, operand 0, single buffered']
    %6 = vsyncpa [#allocation3], 0
    %7 = vsyncpa [#allocation4], 0
    // Predicated region
    $region2: #{tpu_custom_call.1} parent=1 // pred_check
      _
    $region3: #{tpu_custom_call.1} parent=1 // pred_check_branch
      %9 = sbr.rel (0) target = $region5
    $region4: #{tpu_custom_call.1} parent=1 // pred_region
      %s11 = ssub.s32 256, 256
      %12 = vsyncadd [#allocation3], %s11
      %s14 = sshll.u32 [#allocation2], 4
      %s15 = int_to_ptr.vmem [resolvable:$true] %s14
      %17 = dma.hbm_to_vmem [thread:$0]  %s0, 256, %s15, [#allocation3]
    $region5: #{tpu_custom_call.1} parent=1 // pred_fallthru
      _
    // Predicated region
    $region6: #{tpu_custom_call.1} parent=1 // pred_check
      _
    $region7: #{tpu_custom_call.1} parent=1 // pred_check_branch
      %19 = sbr.rel (0) target = $region9
    $region8: #{tpu_custom_call.1} parent=1 // pred_region
      %20 = dma.done [#allocation3], 256
    $region9: #{tpu_custom_call.1} parent=1 // pred_fallthru
      _
    %v21 = vld [vmem:[#allocation2] sm:$0xff]
    %v22 = vld [vmem:[#allocation2 + $0x8] sm:$0xff]
    %v23 = vtanh.pop %v21
    %v24 = vtanh.pop %v22
    %25 = vst [vmem:[#allocation5] sm:$0xff] %v23
    %26 = vst [vmem:[#allocation5 + $0x8] sm:$0xff] %v24
    // Predicated region
    $region10: #{tpu_custom_call.1} parent=1 // pred_check
      _
    $region11: #{tpu_custom_call.1} parent=1 // pred_check_branch
      %28 = sbr.rel (0) target = $region13
    $region12: #{tpu_custom_call.1} parent=1 // pred_region
      %s30 = ssub.s32 256, 256
      %31 = vsyncadd [#allocation4], %s30
      %s33 = sshll.u32 [#allocation5], 4
      %s34 = int_to_ptr.vmem [resolvable:$true] %s33
      %36 = dma.vmem_to_hbm [thread:$0]  %s34, 256, %s1, [#allocation4]
    $region13: #{tpu_custom_call.1} parent=1 // pred_fallthru
      _
    // Predicated region
    $region14: #{tpu_custom_call.1} parent=1 // pred_check
      _
    $region15: #{tpu_custom_call.1} parent=1 // pred_check_branch
      %38 = sbr.rel (0) target = $region17
    $region16: #{tpu_custom_call.1} parent=1 // pred_region
      %39 = dma.done [#allocation4], 256
    $region17: #{tpu_custom_call.1} parent=1 // pred_fallthru
      _
    %40 = vsyncpa [#allocation3], 1
    %41 = vsyncpa [#allocation4], 1

</llo_original>
